<compile_context>
chip_gen: v7x
topology: tpu7x:2x2x1
jax: 0.10.0
libtpu: 0.0.40
codegen_flags: <defaults>
</compile_context>

<pallas_src>
import jax
import jax.numpy as jnp
from jax.experimental import pallas as pl
from jax.experimental.pallas import tpu as pltpu


# ----------------------------- Pallas kernel -------------------------------

def _ce_kernel(logits_ref, tgt_ref, w_ref, num_ref, den_ref):
    """Accumulate sum_i w_i * CE_i and sum_i w_i over row tiles."""
    i = pl.program_id(1)                                        # row-tile axis

    @pl.when(i == 0)
    def _():
        num_ref[...] = jnp.zeros_like(num_ref)
        den_ref[...] = jnp.zeros_like(den_ref)

    x_nat = logits_ref[...]                                     # (TM, V) native dtype
    tgt = tgt_ref[...]                                          # (TM, 1) int32
    w = w_ref[...]                                              # (TM, 1) f32

    # Row max in the native dtype (exact for bf16; upcast only for x - m).
    m = jnp.max(x_nat, axis=-1, keepdims=True).astype(jnp.float32)   # (TM, 1)
    xm = x_nat.astype(jnp.float32) - m                                # (TM, V)

    # (1, V) lane iota broadcast against the (TM, 1) targets.
    col = jax.lax.broadcasted_iota(jnp.int32, (1, x_nat.shape[-1]), 1)
    is_tgt = col == tgt                                               # (TM, V)

    # Single shifted pass: softmax denominator and target logit share xm;
    # the row-max terms cancel in ce = lse - tgt_logit.
    sum_exp = jnp.sum(jnp.exp(xm), axis=-1, keepdims=True)            # (TM, 1)
    tgt_rel = jnp.sum(jnp.where(is_tgt, xm, 0.0), axis=-1, keepdims=True)
    ce = jnp.log(sum_exp) - tgt_rel                                   # (TM, 1)

    # Select (not multiply) so masked rows and garbage rows in the ragged /
    # overflow tiles (which carry zero weight) contribute exactly zero, even
    # if their logits are inf/NaN.
    keep = w > 0.0
    num_ref[...] += jnp.sum(jnp.where(keep, w * ce, 0.0))
    den_ref[...] += jnp.sum(jnp.where(keep, w, 0.0))


# ------------------------------- wrapper ------------------------------------

def _vmem_capacity_bytes(default=64 * 1024 * 1024):
    """Best-effort VMEM capacity query; conservative 64 MiB fallback (v7x)."""
    try:
        info = pltpu.get_tpu_info()
        cap = getattr(info, "vmem_capacity_bytes", None)
        if cap:
            return int(cap)
    except Exception:
        pass
    return default


def _num_tensorcores(default=1):
    """Best-effort TensorCore count; 1 (serial, always correct) fallback."""
    try:
        info = pltpu.get_tpu_info()
        for name in ("num_cores", "core_count", "num_tensorcores",
                     "tensor_core_count", "cores_per_chip"):
            val = getattr(info, name, None)
            if isinstance(val, int) and val > 0:
                return int(val)
    except Exception:
        pass
    return default


def _pick_tile_rows(n, v, itemsize, vmem_cap):
    """Row-tile size from the true in-flight VMEM footprint per row."""
    # dtype-native sublane packing: f32 -> 8, bf16 -> 16, int8/fp8 -> 32.
    sub = {1: 32, 2: 16, 4: 8}.get(itemsize, 8)
    # Per-row in-flight bytes: double-buffered native-dtype input block,
    # f32 working copy (x - m), plus one more f32-sized temporary for the
    # exp / one-hot pass (conservative), plus the lane-padded side columns.
    bytes_per_row = 2 * v * itemsize + 8 * v + 4 * 128 * 4
    budget = int(0.70 * vmem_cap)
    tm = (budget // bytes_per_row) // sub * sub
    # HBM roofline flattens well before 256 rows at LLM vocab (each block is
    # already multi-MiB, so the ~0.35 us/step overhead is <5%).
    tm = max(sub, min(256, int(tm)))
    # Never use a block taller than the (sublane-rounded) row count.
    if n >= sub:
        tm = min(tm, (n // sub) * sub)
    else:
        tm = n                      # block == full array dim (allowed)
    return tm, sub


def _weighted_ce_sums(logits_2d, target_ids, row_weights):
    """Returns (sum_i w_i*ce_i, sum_i w_i) via the Pallas kernel."""
    n, v = logits_2d.shape
    itemsize = jnp.dtype(logits_2d.dtype).itemsize
    cap = _vmem_capacity_bytes()

    tm, _sub = _pick_tile_rows(n, v, itemsize, cap)
    tiles_total = pl.cdiv(n, tm)

    # Generation-aware core split: engage >1 split only when the chip has
    # multiple TensorCores and each core gets at least ~4 tiles.
    num_splits = _num_tensorcores()
    if num_splits > 1 and tiles_total < 4 * num_splits:
        num_splits = 1
    tiles_per_split = pl.cdiv(tiles_total, num_splits)

    # Pad ONLY the tiny per-row side columns to the tile grid; zero weight
    # excludes padded / ragged / overflow rows from both sums exactly.  The
    # big logits tensor is consumed unpadded straight from HBM.
    n_cols_pad = num_splits * tiles_per_split * tm
    tgt_col = target_ids.reshape(n, 1).astype(jnp.int32)
    w_col = row_weights.reshape(n, 1).astype(jnp.float32)
    pad = n_cols_pad - n
    if pad:
        tgt_col = jnp.pad(tgt_col, ((0, pad), (0, 0)))
        w_col = jnp.pad(w_col, ((0, pad), (0, 0)))

    last_blk = tiles_total - 1

    def logits_block(c, i):
        # Clamp so the ragged last tile and the (<= num_splits-1) overflow
        # grid steps stay in bounds; their rows carry zero weight.
        return (jnp.minimum(c * tiles_per_split + i, last_blk), 0)

    def col_block(c, i):
        return (c * tiles_per_split + i, 0)

    # Scoped-VMEM limit from the actual in-flight footprint (not 0.9 * cap).
    inflight = (2 * tm * v * itemsize          # double-buffered logits blocks
                + 2 * tm * v * 4               # f32 copy + exp/one-hot temps
                + 2 * 2 * tm * 128 * 4         # double-buffered side columns
                + 2 * 8 * 128 * 4)             # resident accumulator blocks
    vmem_limit = int(min(cap, max(32 << 20, inflight + (8 << 20))))

    num, den = pl.pallas_call(
        _ce_kernel,
        out_shape=(jax.ShapeDtypeStruct((num_splits, 8, 128), jnp.float32),
                   jax.ShapeDtypeStruct((num_splits, 8, 128), jnp.float32)),
        grid_spec=pltpu.PrefetchScalarGridSpec(
            num_scalar_prefetch=0,
            grid=(num_splits, tiles_per_split),
            in_specs=[
                pl.BlockSpec((tm, v), logits_block),
                pl.BlockSpec((tm, 1), col_block),
                pl.BlockSpec((tm, 1), col_block),
            ],
            out_specs=[
                # (1, 8, 128) blocks: last two dims satisfy (8, 128) for any
                # num_splits; each split's resident block holds its partial
                # sum broadcast across all lanes.
                pl.BlockSpec((1, 8, 128), lambda c, i: (c, 0, 0)),
                pl.BlockSpec((1, 8, 128), lambda c, i: (c, 0, 0)),
            ],
        ),
        compiler_params=pltpu.CompilerParams(
            dimension_semantics=("parallel", "arbitrary"),
            vmem_limit_bytes=vmem_limit),
    )(logits_2d, tgt_col, w_col)

    return jnp.sum(num[:, 0, 0]), jnp.sum(den[:, 0, 0])


# ------------------------------ CaptionLoss --------------------------------

class CaptionLossPallas:
    def __init__(self, vocab_size, frequent_ids, eos_token_id,
                 frequent_word_weight, caption_loss_mult):
        weight = jnp.ones((vocab_size,), dtype=jnp.float32)
        weight = weight.at[jnp.asarray(frequent_ids, dtype=jnp.int32)].set(
            frequent_word_weight)
        self.weight = weight
        self.eos_token_id = eos_token_id
        self.mult = caption_loss_mult

    def __call__(self, pred_logits, input_ids):
        # pred_logits: [B, S-1, V] (f32 or bf16, fed in model dtype -- no
        # wrapper upcast, halving HBM traffic for bf16); input_ids: [B, S].
        b, t, v = pred_logits.shape

        mask = (input_ids[:, :-1] != self.eos_token_id)           # [B, S-1]
        target_ids = input_ids[:, 1:]                              # [B, S-1]

        logits_2d = pred_logits.reshape(b * t, v)
        tgt_flat = target_ids.reshape(b * t)
        mask_flat = mask.reshape(b * t)

        # Per-row weight: class weight of the target, zeroed where masked out.
        row_w = jnp.where(mask_flat, self.weight[tgt_flat], 0.0)

        num, den = _weighted_ce_sums(logits_2d, tgt_flat, row_w)
        # Note: den == 0 (every token masked) gives NaN, matching PyTorch's
        # F.cross_entropy behavior on an empty weighted selection.
        return (num / den) * self.mult


# ------------------------------- reference ---------------------------------

def _reference_loss(pred_logits, input_ids, weight, eos_id, mult):
    mask = input_ids[:, :-1] != eos_id
    b, t, v = pred_logits.shape
    logits = pred_logits.reshape(b * t, v).astype(jnp.float32)
    tgt = input_ids[:, 1:].reshape(b * t)
    m = mask.reshape(b * t)
    logp = jax.nn.log_softmax(logits, axis=-1)
    nll = -jnp.take_along_axis(logp, tgt[:, None], axis=-1)[:, 0]
    w = jnp.where(m, weight[tgt], 0.0)
    return (jnp.sum(w * nll) / jnp.sum(w)) * mult


# --------------------------------- main -------------------------------------

if __name__ == "__main__":
    key = jax.random.PRNGKey(0)

    # Small synthetic config (vocab shrunk from CLIP's 49408 for the demo).
    VOCAB = 512
    EOS_ID = VOCAB - 1                      # CLIP's eos is vocab_size - 1
    FREQUENT_IDS = [0, 1, 2, 3, 5, 7, 11, 13, VOCAB - 2, VOCAB - 1]
    FREQ_WEIGHT = 0.1
    LOSS_MULT = 2.0

    # N = B*(S-1) = 18 rows: deliberately NOT tile-divisible so the ragged
    # last tile + zero-weight exclusion path is exercised.
    B, S = 2, 10
    T = S - 1

    k1, k2 = jax.random.split(key)
    pred_logits = jax.random.normal(k1, (B, T, VOCAB), dtype=jnp.float32)
    input_ids = jax.random.randint(k2, (B, S), 0, VOCAB, dtype=jnp.int32)
    # Make the mask nontrivial: force some eos tokens inside the sequence.
    input_ids = input_ids.at[0, 5].set(EOS_ID).at[1, 3].set(EOS_ID)
    input_ids = input_ids.at[:, -1].set(EOS_ID)

    loss_mod = CaptionLossPallas(VOCAB, FREQUENT_IDS, EOS_ID,
                                 FREQ_WEIGHT, LOSS_MULT)

    # f32 path.
    loss = jax.block_until_ready(loss_mod(pred_logits, input_ids))
    ref = _reference_loss(pred_logits, input_ids, loss_mod.weight,
                          EOS_ID, LOSS_MULT)
    assert jnp.allclose(loss, ref, rtol=1e-5, atol=1e-5), (loss, ref)

    # bf16 path (exercises 16-row sublane tiles + native-dtype row max).
    logits_bf16 = pred_logits.astype(jnp.bfloat16)
    loss_bf16 = jax.block_until_ready(loss_mod(logits_bf16, input_ids))
    ref_bf16 = _reference_loss(logits_bf16, input_ids, loss_mod.weight,
                               EOS_ID, LOSS_MULT)
    assert jnp.allclose(loss_bf16, ref_bf16, rtol=1e-3, atol=1e-3), (
        loss_bf16, ref_bf16)

    print("KERNEL_OK")
</pallas_src>

<mosaic_0001>
module attributes {stable_mosaic.version = 11 : i64} {
  func.func @_ce_kernel(%arg0: i32, %arg1: i32, %arg2: memref<16x512xf32, #tpu.memory_space<vmem>>, %arg3: memref<16x1xi32, #tpu.memory_space<vmem>>, %arg4: memref<16x1xf32, #tpu.memory_space<vmem>>, %arg5: memref<1x8x128xf32, #tpu.memory_space<vmem>>, %arg6: memref<1x8x128xf32, #tpu.memory_space<vmem>>) attributes {dimension_semantics = [#tpu.dimension_semantics<parallel>, #tpu.dimension_semantics<arbitrary>], iteration_bounds = array<i64: 1, 2>, scalar_prefetch = 0 : i64, scratch_operands = 0 : i64, tpu.core_type = #tpu.core_type<tc>, window_params = [{transform_indices = @transform_0, window_bounds = array<i64: 16, 512>}, {transform_indices = @transform_1, window_bounds = array<i64: 16, 1>}, {transform_indices = @transform_2, window_bounds = array<i64: 16, 1>}, {transform_indices = @transform_3, window_bounds = array<i64: 1, 8, 128>}, {transform_indices = @transform_4, window_bounds = array<i64: 1, 8, 128>}]} {
    %c0_i32 = arith.constant 0 : i32
    %0 = arith.cmpi eq, %arg1, %c0_i32 : i32
    %1 = arith.extui %0 : i1 to i32
    %c0_i32_0 = arith.constant 0 : i32
    %2 = arith.cmpi ne, %1, %c0_i32_0 : i32
    scf.if %2 {
      %cst_26 = arith.constant 0.000000e+00 : f32
      %46 = vector.broadcast %cst_26 : f32 to vector<1x8x128xf32>
      %c0_27 = arith.constant 0 : index
      %c0_28 = arith.constant 0 : index
      %c0_29 = arith.constant 0 : index
      %47 = vector.load %arg5[%c0_27, %c0_28, %c0_29] : memref<1x8x128xf32, #tpu.memory_space<vmem>>, vector<1x8x128xf32>
      tpu.vector_store %arg5[%c0_27, %c0_28, %c0_29], %46 {strides = array<i32>} : memref<1x8x128xf32, #tpu.memory_space<vmem>>, vector<1x8x128xf32>,
      %cst_30 = arith.constant 0.000000e+00 : f32
      %48 = vector.broadcast %cst_30 : f32 to vector<1x8x128xf32>
      %c0_31 = arith.constant 0 : index
      %c0_32 = arith.constant 0 : index
      %c0_33 = arith.constant 0 : index
      %49 = vector.load %arg6[%c0_31, %c0_32, %c0_33] : memref<1x8x128xf32, #tpu.memory_space<vmem>>, vector<1x8x128xf32>
      tpu.vector_store %arg6[%c0_31, %c0_32, %c0_33], %48 {strides = array<i32>} : memref<1x8x128xf32, #tpu.memory_space<vmem>>, vector<1x8x128xf32>,
    } else {
    }
    %c0 = arith.constant 0 : index
    %c0_1 = arith.constant 0 : index
    %3 = vector.load %arg2[%c0, %c0_1] : memref<16x512xf32, #tpu.memory_space<vmem>>, vector<16x512xf32>
    %c0_2 = arith.constant 0 : index
    %c0_3 = arith.constant 0 : index
    %4 = vector.load %arg3[%c0_2, %c0_3] : memref<16x1xi32, #tpu.memory_space<vmem>>, vector<16x1xi32>
    %c0_4 = arith.constant 0 : index
    %c0_5 = arith.constant 0 : index
    %5 = vector.load %arg4[%c0_4, %c0_5] : memref<16x1xf32, #tpu.memory_space<vmem>>, vector<16x1xf32>
    %cst = arith.constant dense<0xFF800000> : vector<16xf32>
    %6 = vector.multi_reduction <maximumf>, %3, %cst [1] : vector<16x512xf32> to vector<16xf32>
    %7 = vector.shape_cast %6 : vector<16xf32> to vector<16x1xf32>
    %8 = vector.broadcast %7 : vector<16x1xf32> to vector<16x512xf32>
    %9 = arith.subf %3, %8 : vector<16x512xf32>
    %10 = tpu.iota {dimensions = array<i32: 1>} : vector<1x512xi32>
    %11 = vector.broadcast %10 : vector<1x512xi32> to vector<16x512xi32>
    %12 = vector.broadcast %4 : vector<16x1xi32> to vector<16x512xi32>
    %13 = arith.cmpi eq, %11, %12 : vector<16x512xi32>
    %14 = math.exp %9 : vector<16x512xf32>
    %cst_6 = arith.constant dense<0.000000e+00> : vector<16xf32>
    %15 = vector.multi_reduction <add>, %14, %cst_6 [1] : vector<16x512xf32> to vector<16xf32>
    %16 = vector.shape_cast %15 : vector<16xf32> to vector<16x1xf32>
    %cst_7 = arith.constant 0.000000e+00 : f32
    %17 = vector.broadcast %cst_7 : f32 to vector<16x512xf32>
    %18 = arith.select %13, %9, %17 : vector<16x512xi1>, vector<16x512xf32>
    %cst_8 = arith.constant dense<0.000000e+00> : vector<16xf32>
    %19 = vector.multi_reduction <add>, %18, %cst_8 [1] : vector<16x512xf32> to vector<16xf32>
    %20 = vector.shape_cast %19 : vector<16xf32> to vector<16x1xf32>
    %21 = math.log %16 : vector<16x1xf32>
    %22 = arith.subf %21, %20 : vector<16x1xf32>
    %cst_9 = arith.constant 0.000000e+00 : f32
    %23 = vector.broadcast %cst_9 : f32 to vector<16x1xf32>
    %24 = arith.cmpf ogt, %5, %23 : vector<16x1xf32>
    %c0_10 = arith.constant 0 : index
    %c0_11 = arith.constant 0 : index
    %c0_12 = arith.constant 0 : index
    %25 = vector.load %arg5[%c0_10, %c0_11, %c0_12] : memref<1x8x128xf32, #tpu.memory_space<vmem>>, vector<1x8x128xf32>
    %26 = arith.mulf %5, %22 : vector<16x1xf32>
    %cst_13 = arith.constant 0.000000e+00 : f32
    %27 = vector.broadcast %cst_13 : f32 to vector<16x1xf32>
    %28 = arith.select %24, %26, %27 : vector<16x1xi1>, vector<16x1xf32>
    %29 = vector.shape_cast %28 : vector<16x1xf32> to vector<1x16x1xf32>
    %cst_14 = arith.constant dense<0.000000e+00> : vector<1xf32>
    %30 = vector.multi_reduction <add>, %29, %cst_14 [1, 2] : vector<1x16x1xf32> to vector<1xf32>
    %31 = vector.shape_cast %30 : vector<1xf32> to vector<1x1x1xf32>
    %32 = vector.extract %31[0, 0, 0] : f32 from vector<1x1x1xf32>
    %33 = vector.broadcast %32 : f32 to vector<1x8x128xf32>
    %34 = arith.addf %25, %33 : vector<1x8x128xf32>
    %c0_15 = arith.constant 0 : index
    %c0_16 = arith.constant 0 : index
    %c0_17 = arith.constant 0 : index
    %35 = vector.load %arg5[%c0_15, %c0_16, %c0_17] : memref<1x8x128xf32, #tpu.memory_space<vmem>>, vector<1x8x128xf32>
    tpu.vector_store %arg5[%c0_15, %c0_16, %c0_17], %34 {strides = array<i32>} : memref<1x8x128xf32, #tpu.memory_space<vmem>>, vector<1x8x128xf32>,
    %c0_18 = arith.constant 0 : index
    %c0_19 = arith.constant 0 : index
    %c0_20 = arith.constant 0 : index
    %36 = vector.load %arg6[%c0_18, %c0_19, %c0_20] : memref<1x8x128xf32, #tpu.memory_space<vmem>>, vector<1x8x128xf32>
    %cst_21 = arith.constant 0.000000e+00 : f32
    %37 = vector.broadcast %cst_21 : f32 to vector<16x1xf32>
    %38 = arith.select %24, %5, %37 : vector<16x1xi1>, vector<16x1xf32>
    %39 = vector.shape_cast %38 : vector<16x1xf32> to vector<1x16x1xf32>
    %cst_22 = arith.constant dense<0.000000e+00> : vector<1xf32>
    %40 = vector.multi_reduction <add>, %39, %cst_22 [1, 2] : vector<1x16x1xf32> to vector<1xf32>
    %41 = vector.shape_cast %40 : vector<1xf32> to vector<1x1x1xf32>
    %42 = vector.extract %41[0, 0, 0] : f32 from vector<1x1x1xf32>
    %43 = vector.broadcast %42 : f32 to vector<1x8x128xf32>
    %44 = arith.addf %36, %43 : vector<1x8x128xf32>
    %c0_23 = arith.constant 0 : index
    %c0_24 = arith.constant 0 : index
    %c0_25 = arith.constant 0 : index
    %45 = vector.load %arg6[%c0_23, %c0_24, %c0_25] : memref<1x8x128xf32, #tpu.memory_space<vmem>>, vector<1x8x128xf32>
    tpu.vector_store %arg6[%c0_23, %c0_24, %c0_25], %44 {strides = array<i32>} : memref<1x8x128xf32, #tpu.memory_space<vmem>>, vector<1x8x128xf32>,
    return
  }
  func.func @transform_0(%arg0: i32, %arg1: i32) -> (i32, i32) {
    %c2_i32 = arith.constant 2 : i32
    %0 = arith.muli %arg0, %c2_i32 : i32
    %1 = arith.addi %0, %arg1 : i32
    %c1_i32 = arith.constant 1 : i32
    %2 = arith.minsi %1, %c1_i32 : i32
    %c0_i32 = arith.constant 0 : i32
    %c0_i32_0 = arith.constant 0 : i32
    return %2, %c0_i32 : i32, i32
  }
  func.func @transform_1(%arg0: i32, %arg1: i32) -> (i32, i32) {
    %c2_i32 = arith.constant 2 : i32
    %0 = arith.muli %arg0, %c2_i32 : i32
    %1 = arith.addi %0, %arg1 : i32
    %c0_i32 = arith.constant 0 : i32
    %c0_i32_0 = arith.constant 0 : i32
    return %1, %c0_i32 : i32, i32
  }
  func.func @transform_2(%arg0: i32, %arg1: i32) -> (i32, i32) {
    %c2_i32 = arith.constant 2 : i32
    %0 = arith.muli %arg0, %c2_i32 : i32
    %1 = arith.addi %0, %arg1 : i32
    %c0_i32 = arith.constant 0 : i32
    %c0_i32_0 = arith.constant 0 : i32
    return %1, %c0_i32 : i32, i32
  }
  func.func @transform_3(%arg0: i32, %arg1: i32) -> (i32, i32, i32) {
    %c0_i32 = arith.constant 0 : i32
    %c0_i32_0 = arith.constant 0 : i32
    %c0_i32_1 = arith.constant 0 : i32
    return %arg0, %c0_i32, %c0_i32_0 : i32, i32, i32
  }
  func.func @transform_4(%arg0: i32, %arg1: i32) -> (i32, i32, i32) {
    %c0_i32 = arith.constant 0 : i32
    %c0_i32_0 = arith.constant 0 : i32
    %c0_i32_1 = arith.constant 0 : i32
    return %arg0, %c0_i32, %c0_i32_0 : i32, i32, i32
  }
}

</mosaic_0001>

<llo_original>
// kernel: tpu_custom_call.1
$region0: #{tpu_custom_call.1}
  #allocation0 [shape = 'u32[]', space=smem, size = 0x4, offset = 0x4, fixed_abs, tag = 'smem constant byte address 0x4 - core index']
  #allocation1 [shape = 'u32[144,128]{1,0:T(1,128)}', space=vmem, size = 0x12000, scoped, tag = 'internal scratch']
  %s0 = inlined_call_operand.hbm [shape: f32[18,512], index: 0, kind: input, shape index: {}]
  %s1 = inlined_call_operand.vmem [shape: s32[32,1], index: 1, kind: input, shape index: {}]
  %s2 = inlined_call_operand.vmem [shape: f32[32,1], index: 2, kind: input, shape index: {}]
  %s3 = inlined_call_operand.hbm [shape: f32[1,8,128], index: 3, kind: output, shape index: {0}]
  %s4 = inlined_call_operand.hbm [shape: f32[1,8,128], index: 4, kind: output, shape index: {1}]
  %5 = xla_tuple %s3, %s4
  %s6 = sld [smem:[#allocation0]]
  $region61: #{tpu_custom_call.1} parent=0
    _
  %s8 = ssub.s32 1, %s6
  %s9 = scalar_select 0, %s8, %s6
  $region1: #{tpu_custom_call.1} parent=0
    #allocation2 [shape = 'u8[65536]{0}', space=vmem, size = 0x10000, scoped, tag = 'input window, operand 0']
    #allocation3 [shape = 's32[2]{0}', space=sflag, size = 0x8, scoped, tag = 'scoped memory for tpu_custom_call.1']
    #allocation4 [shape = 's32[2]{0}', space=sflag, size = 0x8, scoped, tag = 'scoped memory for tpu_custom_call.1']
    #allocation5 [shape = 'u8[4096]{0}', space=vmem, size = 0x1000, scoped, tag = 'output window, operand 0, single buffered']
    #allocation6 [shape = 'u8[4096]{0}', space=vmem, size = 0x1000, scoped, tag = 'output window, operand 1, single buffered']
    #allocation7 [shape = 's32[1]{0}', space=sflag, size = 0x4, scoped, tag = 'scoped memory for tpu_custom_call.1']
    %10 = vsyncpa [#allocation3], 0
    %s11 = scalar_lea.sflag [#allocation3], 1
    %12 = vsyncpa %s11, 0
    %13 = vsyncpa [#allocation4], 0
    %14 = vsyncpa [#allocation7], 0
    loop: start=0, step=1, limit=4
    $region2: #{tpu_custom_call.1} parent=1 // loop_pre_header
      _
    $region3: #{tpu_custom_call.1} parent=1 // loop_header
      %s16 = sphi 0, %s20
      %p17 = scmp.ge.s32.totalorder %s16, 4
      %s23 = sphi 0, %s35
      %s24 = sphi 0, %s31
      %s25 = sphi 0, %s23
      %s26 = sphi 0, %s24
      %s27 = sphi 0, %s25
      %s28 = sphi 0, %s26
      %s46 = sphi 0, %s48
      %s49 = sphi 0, %s46
      %s50 = sphi 0, %s49
      %s66 = sphi 0, %s50
      %s76 = sphi 0, %s78
      %s79 = sphi 0, %s76
      %s80 = sphi 0, %s79
      %s96 = sphi 0, %s80
      %s106 = sphi 0, %s108
      %s109 = sphi 0, %s106
      %s110 = sphi 0, %s109
      %s126 = sphi 0, %s110
      %s132 = sphi 0, %s134
      %s135 = sphi 0, %s132
      %s136 = sphi 0, %s135
      %s152 = sphi 0, %s136
      %s158 = sphi 0, %s160
      %s161 = sphi 0, %s158
      %s162 = sphi 0, %s161
      %s178 = sphi 0, %s162
    $region4: #{tpu_custom_call.1} parent=1 // loop_header_branch
      %19 = sbr.rel (%p17) target = $region8
    $region5: #{tpu_custom_call.1} parent=1 // loop_body
      %s21 = ssub.s32 %s16, 1
      %s22 = ssub.s32 %s16, 2
      %s29 = sadd.s32 1, %s24
      %p30 = scmp.ge.s32.totalorder %s29, 2
      %s31 = scalar_select %p30, 0, %s29
      %s32 = sadd.s32 1, %s23
      %s33 = scalar_select %p30, %s32, %s23
      %p34 = scmp.ge.s32.totalorder %s33, 1
      %s35 = scalar_select %p34, 0, %s33
      %s36 = smul.u32 %s23, 2
      %s37 = sadd.s32 %s36, %s24
      %p38 = scmp.lt.s32.totalorder %s37, 1
      %s39 = scalar_select %p38, %s37, 1
      %s40 = smul.u32 %s35, 2
      %s41 = sadd.s32 %s40, %s31
      %p42 = scmp.lt.s32.totalorder %s41, 1
      %s43 = scalar_select %p42, %s41, 1
      %s44 = ssub.s32 %s39, %s43
      %p45 = scmp.eq.s32.totalorder %s44, 0
      %s47 = sadd.s32 %s46, 1
      %s48 = scalar_select %p45, %s46, %s47
      %p51 = pneg %p45
      %p52 = scmp.eq.s32.totalorder %s16, 1
      %p53 = por %p51, %p52
      %p54 = scmp.ne.s32.totalorder %s46, %s49
      %p55 = scmp.eq.s32.totalorder %s16, 0
      %p56 = por %p54, %p55
      %p57 = scmp.ne.s32.totalorder %s46, %s49
      %p58 = scmp.eq.s32.totalorder %s21, 1
      %p59 = por %p57, %p58
      %p60 = scmp.ne.s32.totalorder %s49, %s50
      %p61 = scmp.eq.s32.totalorder %s21, 0
      %p62 = por %p60, %p61
      %p63 = scmp.ne.s32.totalorder %s49, %s50
      %p64 = scmp.eq.s32.totalorder %s22, 1
      %p65 = por %p63, %p64
      %p67 = scmp.ne.s32.totalorder %s50, %s66
      %p68 = scmp.eq.s32.totalorder %s22, 0
      %p69 = por %p67, %p68
      %s70 = smul.u32 %s23, 2
      %s71 = sadd.s32 %s70, %s24
      %s72 = smul.u32 %s35, 2
      %s73 = sadd.s32 %s72, %s31
      %s74 = ssub.s32 %s71, %s73
      %p75 = scmp.eq.s32.totalorder %s74, 0
      %s77 = sadd.s32 %s76, 1
      %s78 = scalar_select %p75, %s76, %s77
      %p81 = pneg %p75
      %p82 = scmp.eq.s32.totalorder %s16, 1
      %p83 = por %p81, %p82
      %p84 = scmp.ne.s32.totalorder %s76, %s79
      %p85 = scmp.eq.s32.totalorder %s16, 0
      %p86 = por %p84, %p85
      %p87 = scmp.ne.s32.totalorder %s76, %s79
      %p88 = scmp.eq.s32.totalorder %s21, 1
      %p89 = por %p87, %p88
      %p90 = scmp.ne.s32.totalorder %s79, %s80
      %p91 = scmp.eq.s32.totalorder %s21, 0
      %p92 = por %p90, %p91
      %p93 = scmp.ne.s32.totalorder %s79, %s80
      %p94 = scmp.eq.s32.totalorder %s22, 1
      %p95 = por %p93, %p94
      %p97 = scmp.ne.s32.totalorder %s80, %s96
      %p98 = scmp.eq.s32.totalorder %s22, 0
      %p99 = por %p97, %p98
      %s100 = smul.u32 %s23, 2
      %s101 = sadd.s32 %s100, %s24
      %s102 = smul.u32 %s35, 2
      %s103 = sadd.s32 %s102, %s31
      %s104 = ssub.s32 %s101, %s103
      %p105 = scmp.eq.s32.totalorder %s104, 0
      %s107 = sadd.s32 %s106, 1
      %s108 = scalar_select %p105, %s106, %s107
      %p111 = pneg %p105
      %p112 = scmp.eq.s32.totalorder %s16, 1
      %p113 = por %p111, %p112
      %p114 = scmp.ne.s32.totalorder %s106, %s109
      %p115 = scmp.eq.s32.totalorder %s16, 0
      %p116 = por %p114, %p115
      %p117 = scmp.ne.s32.totalorder %s106, %s109
      %p118 = scmp.eq.s32.totalorder %s21, 1
      %p119 = por %p117, %p118
      %p120 = scmp.ne.s32.totalorder %s109, %s110
      %p121 = scmp.eq.s32.totalorder %s21, 0
      %p122 = por %p120, %p121
      %p123 = scmp.ne.s32.totalorder %s109, %s110
      %p124 = scmp.eq.s32.totalorder %s22, 1
      %p125 = por %p123, %p124
      %p127 = scmp.ne.s32.totalorder %s110, %s126
      %p128 = scmp.eq.s32.totalorder %s22, 0
      %p129 = por %p127, %p128
      %s130 = ssub.s32 %s23, %s35
      %p131 = scmp.eq.s32.totalorder %s130, 0
      %s133 = sadd.s32 %s132, 1
      %s134 = scalar_select %p131, %s132, %s133
      %p137 = pneg %p131
      %p138 = scmp.eq.s32.totalorder %s16, 1
      %p139 = por %p137, %p138
      %p140 = scmp.ne.s32.totalorder %s132, %s135
      %p141 = scmp.eq.s32.totalorder %s16, 0
      %p142 = por %p140, %p141
      %p143 = scmp.ne.s32.totalorder %s132, %s135
      %p144 = scmp.eq.s32.totalorder %s21, 1
      %p145 = por %p143, %p144
      %p146 = scmp.ne.s32.totalorder %s135, %s136
      %p147 = scmp.eq.s32.totalorder %s21, 0
      %p148 = por %p146, %p147
      %p149 = scmp.ne.s32.totalorder %s135, %s136
      %p150 = scmp.eq.s32.totalorder %s22, 1
      %p151 = por %p149, %p150
      %p153 = scmp.ne.s32.totalorder %s136, %s152
      %p154 = scmp.eq.s32.totalorder %s22, 0
      %p155 = por %p153, %p154
      %s156 = ssub.s32 %s23, %s35
      %p157 = scmp.eq.s32.totalorder %s156, 0
      %s159 = sadd.s32 %s158, 1
      %s160 = scalar_select %p157, %s158, %s159
      %p163 = pneg %p157
      %p164 = scmp.eq.s32.totalorder %s16, 1
      %p165 = por %p163, %p164
      %p166 = scmp.ne.s32.totalorder %s158, %s161
      %p167 = scmp.eq.s32.totalorder %s16, 0
      %p168 = por %p166, %p167
      %p169 = scmp.ne.s32.totalorder %s158, %s161
      %p170 = scmp.eq.s32.totalorder %s21, 1
      %p171 = por %p169, %p170
      %p172 = scmp.ne.s32.totalorder %s161, %s162
      %p173 = scmp.eq.s32.totalorder %s21, 0
      %p174 = por %p172, %p173
      %p175 = scmp.ne.s32.totalorder %s161, %s162
      %p176 = scmp.eq.s32.totalorder %s22, 1
      %p177 = por %p175, %p176
      %p179 = scmp.ne.s32.totalorder %s162, %s178
      %p180 = scmp.eq.s32.totalorder %s22, 0
      %p181 = por %p179, %p180
      %p182 = scmp.le.s32.totalorder 1, %s16
      %p183 = scmp.lt.s32.totalorder %s16, 3
      %p184 = pnand %p182, %p183
      %p185 = pneg %p184
      // Predicated region
      $region9: #{tpu_custom_call.1} parent=5 // pred_check
        _
      $region10: #{tpu_custom_call.1} parent=5 // pred_check_branch
        %187 = sbr.rel (%p184) target = $region12
      $region11: #{tpu_custom_call.1} parent=5 // pred_region
        %s188 = ssub.s32 %s16, 1
      $region12: #{tpu_custom_call.1} parent=5 // pred_fallthru
        _
      %p189 = scmp.lt.s32.totalorder %s16, 2
      // Predicated region
      $region13: #{tpu_custom_call.1} parent=5 // pred_check
        %p190 = pneg %p189
      $region14: #{tpu_custom_call.1} parent=5 // pred_check_branch
        %192 = sbr.rel (%p190) target = $region16
      $region15: #{tpu_custom_call.1} parent=5 // pred_region
        // Predicated region
        $region17: #{tpu_custom_call.1} parent=15 // pred_check
          %p193 = pneg %p56
        $region18: #{tpu_custom_call.1} parent=15 // pred_check_branch
          %195 = sbr.rel (%p193) target = $region20
        $region19: #{tpu_custom_call.1} parent=15 // pred_region
          %s196 = sand.u32 %s46, 1
          %s197 = scalar_lea.sflag [#allocation3], %s196
          %s198 = sand.u32 %s46, 1
          %s199 = smul.addr %s198, 64
          %s200 = scalar_lea.vmem [#allocation2], %s199
          %s201 = smul.u32 %s23, 2
          %s202 = sadd.s32 %s201, %s24
          %p203 = scmp.lt.s32.totalorder %s202, 1
          %s204 = scalar_select %p203, %s202, 1
          %s205 = smul.u32 2, %s204
          %s206 = ssub.s32 3, %s205
          %p207 = scmp.lt.s32.totalorder %s206, 2
          %s208 = scalar_select %p207, %s206, 2
          %s209 = smul.u32 128, %s208
          %s210 = smul.u32 %s209, 4
          %s212 = ssub.s32 1024, %s210
          %213 = vsyncadd %s197, %s212
          %p214 = scmp.ne.s32.totalorder 0, %s210
          %s215 = smul.addr %s205, 4
          %s216 = smul.addr %s215, 128
          %s217 = scalar_lea.hbm %s0, %s216
          %s218 = smul.u32 32, %s208
          %s219 = sshll.u32 %s200, 4
          %s220 = int_to_ptr.vmem [resolvable:$true] %s219
          %s221 = sshll.u32 %s218, 4
          %225 = dma.hbm_to_vmem [thread:$0]  (%p214), %s217, %s221, %s220, %s197, 512, 512, 32
        $region20: #{tpu_custom_call.1} parent=15 // pred_fallthru
          _
        // Predicated region
        $region21: #{tpu_custom_call.1} parent=15 // pred_check
          %p226 = pneg %p86
        $region22: #{tpu_custom_call.1} parent=15 // pred_check_branch
          %228 = sbr.rel (%p226) target = $region24
        $region23: #{tpu_custom_call.1} parent=15 // pred_region
          %s229 = smul.u32 %s23, 2
          %s230 = sadd.s32 %s229, %s24
          %s231 = smul.u32 2, %s230
          %p232 = scmp.lt.s32.totalorder %s231, 3
          %s233 = scalar_select %p232, %s231, 3
          %s234 = smul.addr %s233, 8
          %s235 = scalar_lea.vmem %s1, %s234
          %s236 = smul.u32 %s23, 2
          %s237 = sadd.s32 %s236, %s24
          %s238 = smul.u32 2, %s237
        $region24: #{tpu_custom_call.1} parent=15 // pred_fallthru
          _
        // Predicated region
        $region25: #{tpu_custom_call.1} parent=15 // pred_check
          %p239 = pneg %p116
        $region26: #{tpu_custom_call.1} parent=15 // pred_check_branch
          %241 = sbr.rel (%p239) target = $region28
        $region27: #{tpu_custom_call.1} parent=15 // pred_region
          %s242 = smul.u32 %s23, 2
          %s243 = sadd.s32 %s242, %s24
          %s244 = smul.u32 2, %s243
          %p245 = scmp.lt.s32.totalorder %s244, 3
          %s246 = scalar_select %p245, %s244, 3
          %s247 = smul.addr %s246, 8
          %s248 = scalar_lea.vmem %s2, %s247
          %s249 = smul.u32 %s23, 2
          %s250 = sadd.s32 %s249, %s24
          %s251 = smul.u32 2, %s250
        $region28: #{tpu_custom_call.1} parent=15 // pred_fallthru
          _
      $region16: #{tpu_custom_call.1} parent=5 // pred_fallthru
        _
      %p252 = scmp.le.s32.totalorder 1, %s16
      %p253 = scmp.lt.s32.totalorder %s16, 3
      %p254 = pnand %p252, %p253
      %p255 = pneg %p254
      // Predicated region
      $region29: #{tpu_custom_call.1} parent=5 // pred_check
        _
      $region30: #{tpu_custom_call.1} parent=5 // pred_check_branch
        %257 = sbr.rel (%p254) target = $region32
      $region31: #{tpu_custom_call.1} parent=5 // pred_region
        %s258 = ssub.s32 %s16, 1
        %s259 = sand.u32 %s49, 1
        %s260 = scalar_lea.sflag [#allocation3], %s259
        %s261 = sand.u32 %s49, 1
        %s262 = smul.addr %s261, 64
        %s263 = scalar_lea.vmem [#allocation2], %s262
        // Predicated region
        $region33: #{tpu_custom_call.1} parent=31 // pred_check
          %p264 = pneg %p62
        $region34: #{tpu_custom_call.1} parent=31 // pred_check_branch
          %266 = sbr.rel (%p264) target = $region36
        $region35: #{tpu_custom_call.1} parent=31 // pred_region
          %267 = dma.done %s260, 1024
        $region36: #{tpu_custom_call.1} parent=31 // pred_fallthru
          _
        %s268 = sand.u32 %s49, 1
        %s269 = scalar_lea.sflag [#allocation3], %s268
        %s270 = sand.u32 %s49, 1
        %s271 = smul.addr %s270, 64
        %s272 = scalar_lea.vmem [#allocation2], %s271
        %p273 = pneg %p62
        %p274 = pneg %p59
        %s275 = smul.u32 %s25, 2
        %s276 = sadd.s32 %s275, %s26
        %s277 = smul.u32 2, %s276
        %p278 = scmp.lt.s32.totalorder %s277, 3
        %s279 = scalar_select %p278, %s277, 3
        %s280 = smul.addr %s279, 8
        %s281 = scalar_lea.vmem %s1, %s280
        %p282 = pneg %p92
        %p283 = pneg %p89
        %s284 = smul.u32 %s25, 2
        %s285 = sadd.s32 %s284, %s26
        %s286 = smul.u32 2, %s285
        %p287 = scmp.lt.s32.totalorder %s286, 3
        %s288 = scalar_select %p287, %s286, 3
        %s289 = smul.addr %s288, 8
        %s290 = scalar_lea.vmem %s2, %s289
        %p291 = pneg %p122
        %p292 = pneg %p119
        %p293 = pneg %p148
        %p294 = pneg %p145
        %p295 = pneg %p174
        %p296 = pneg %p171
        %s297 = smul.u32 %s25, 2
        %s298 = sadd.s32 %s297, %s26
        %p299 = scmp.lt.s32.totalorder %s298, 1
        %s300 = scalar_select %p299, %s298, 1
        %s301 = smul.u32 2, %s300
        %s302 = ssub.s32 3, %s301
        %p303 = scmp.lt.s32.totalorder %s302, 2
        %s304 = scalar_select %p303, %s302, 2
        %s305 = smul.u32 128, %s304
        %s306 = smul.u32 %s305, 4
        %s307 = smul.u32 %s25, 2
        %s308 = sadd.s32 %s307, %s26
        %s309 = smul.u32 2, %s308
        %p310 = scmp.lt.s32.totalorder %s309, 3
        %s311 = scalar_select %p310, %s309, 3
        %s312 = smul.addr %s311, 8
        %s313 = scalar_lea.vmem %s1, %s312
        %s314 = smul.u32 %s25, 2
        %s315 = sadd.s32 %s314, %s26
        %s316 = smul.u32 2, %s315
        %s317 = smul.u32 %s25, 2
        %s318 = sadd.s32 %s317, %s26
        %s319 = smul.u32 2, %s318
        %p320 = scmp.lt.s32.totalorder %s319, 3
        %s321 = scalar_select %p320, %s319, 3
        %s322 = smul.addr %s321, 8
        %s323 = scalar_lea.vmem %s2, %s322
        %s324 = smul.u32 %s25, 2
        %s325 = sadd.s32 %s324, %s26
        %s326 = smul.u32 2, %s325
        %p327 = scmp.eq.s32.totalorder %s26, 0
        // Predicated region
        $region37: #{tpu_custom_call.1} parent=31 // pred_check
          %p328 = pneg %p327
        $region38: #{tpu_custom_call.1} parent=31 // pred_check_branch
          %330 = sbr.rel (%p328) target = $region40
        $region39: #{tpu_custom_call.1} parent=31 // pred_region
          %331 = vst [vmem:[#allocation5] sm:$0xff] 0.0
          %332 = vst [vmem:[#allocation6] sm:$0xff] 0.0
        $region40: #{tpu_custom_call.1} parent=31 // pred_fallthru
          _
        %v333 = vld [vmem:[%s263] sm:$0xff]
        %v334 = vld [vmem:[%s263 + $0x8] sm:$0xff]
        %v335 = vld [vmem:[%s263 + $0x10] sm:$0xff]
        %v336 = vld [vmem:[%s263 + $0x18] sm:$0xff]
        %v337 = vld [vmem:[%s263 + $0x20] sm:$0xff]
        %v338 = vld [vmem:[%s263 + $0x28] sm:$0xff]
        %v339 = vld [vmem:[%s263 + $0x30] sm:$0xff]
        %v340 = vld [vmem:[%s263 + $0x38] sm:$0xff]
        %v341 = vld [vmem:[%s313] sm:$0xff]
        %v342 = vld [vmem:[%s313 + $0x8] sm:$0xff]
        %v343 = vld [vmem:[%s323] sm:$0xff]
        %v344 = vld [vmem:[%s323 + $0x8] sm:$0xff]
        %v345 = vmax.f32 %v333, %v335
        %v346 = vmax.f32 %v334, %v336
        %v347 = vmax.f32 %v345, %v346
        %348 = vmax.xlane.f32.xlu0 %v347
        %v349 = vpop.xlane.xlu0 %348
        %v350 = vmax.f32 %v337, %v339
        %v351 = vmax.f32 %v338, %v340
        %v352 = vmax.f32 %v350, %v351
        %353 = vmax.xlane.f32.xlu0 %v352
        %v354 = vpop.xlane.xlu0 %353
        %v355 = vsub.f32 %v333, %v349
        %v356 = vsub.f32 %v334, %v349
        %v357 = vsub.f32 %v335, %v349
        %v358 = vsub.f32 %v336, %v349
        %v359 = vsub.f32 %v337, %v354
        %v360 = vsub.f32 %v338, %v354
        %v361 = vsub.f32 %v339, %v354
        %v362 = vsub.f32 %v340, %v354
        %v363 = vlaneseq
        %v364 = vand.u32 %v363, 127
        %v365 = vadd.s32 %v364, 128
        %v366 = vadd.s32 %v364, 256
        %v367 = vadd.s32 %v364, 384
        %368 = vset.pattern.permute.xlu0 0
        %369 = vperm.xlu0 %368, %v341
        %v370 = vpop.permute.xlu0 %369
        %371 = vset.pattern.permute.xlu0 0
        %372 = vperm.xlu0 %371, %v342
        %v373 = vpop.permute.xlu0 %372
        %vm374 = vcmp.eq.s32.totalorder %v364, %v370
        %vm375 = vcmp.eq.s32.totalorder %v365, %v370
        %vm376 = vcmp.eq.s32.totalorder %v366, %v370
        %vm377 = vcmp.eq.s32.totalorder %v367, %v370
        %vm378 = vcmp.eq.s32.totalorder %v364, %v373
        %vm379 = vcmp.eq.s32.totalorder %v365, %v373
        %vm380 = vcmp.eq.s32.totalorder %v366, %v373
        %vm381 = vcmp.eq.s32.totalorder %v367, %v373
        %v382 = vmul.f32 %v355, 1.442695
        %v383 = vpow.pop %v382
        %v384 = vmul.f32 %v356, 1.442695
        %v385 = vpow.pop %v384
        %v386 = vmul.f32 %v357, 1.442695
        %v387 = vpow.pop %v386
        %v388 = vmul.f32 %v358, 1.442695
        %v389 = vpow.pop %v388
        %v390 = vmul.f32 %v359, 1.442695
        %v391 = vpow.pop %v390
        %v392 = vmul.f32 %v360, 1.442695
        %v393 = vpow.pop %v392
        %v394 = vmul.f32 %v361, 1.442695
        %v395 = vpow.pop %v394
        %v396 = vmul.f32 %v362, 1.442695
        %v397 = vpow.pop %v396
        %v398 = vadd.f32 %v383, %v385
        %v399 = vadd.f32 %v398, %v387
        %v400 = vadd.f32 %v399, %v389
        %401 = vadd.xlane.f32.xlu0 %v400
        %v402 = vpop.xlane.xlu0 %401
        %v403 = vadd.f32 %v391, %v393
        %v404 = vadd.f32 %v403, %v395
        %v405 = vadd.f32 %v404, %v397
        %406 = vadd.xlane.f32.xlu0 %v405
        %v407 = vpop.xlane.xlu0 %406
        %v408 = vsel %vm374, %v355, 0.0
        %v409 = vsel %vm375, %v356, 0.0
        %v410 = vsel %vm376, %v357, 0.0
        %v411 = vsel %vm377, %v358, 0.0
        %v412 = vsel %vm378, %v359, 0.0
        %v413 = vsel %vm379, %v360, 0.0
        %v414 = vsel %vm380, %v361, 0.0
        %v415 = vsel %vm381, %v362, 0.0
        %v416 = vadd.f32 %v408, %v409
        %v417 = vadd.f32 %v416, %v410
        %v418 = vadd.f32 %v417, %v411
        %419 = vadd.xlane.f32.xlu0 %v418
        %v420 = vpop.xlane.xlu0 %419
        %v421 = vadd.f32 %v412, %v413
        %v422 = vadd.f32 %v421, %v414
        %v423 = vadd.f32 %v422, %v415
        %424 = vadd.xlane.f32.xlu0 %v423
        %v425 = vpop.xlane.xlu0 %424
        %v426 = vlog2.pop %v402
        %v427 = vmul.f32 %v426, 0.6931472
        %v428 = vlog2.pop %v407
        %v429 = vmul.f32 %v428, 0.6931472
        %v430 = vsub.f32 %v427, %v420
        %v431 = vsub.f32 %v429, %v425
        %vm432 = vcmp.gt.f32.partialorder %v343, 0.0
        %vm433 = vcmp.gt.f32.partialorder %v344, 0.0
        %v434 = vld [vmem:[#allocation5] sm:$0xff]
        %v435 = vmul.f32 %v343, %v430
        %v436 = vmul.f32 %v344, %v431
        %v437 = vsel %vm432, %v435, 0.0
        %v438 = vsel %vm433, %v436, 0.0
        %vm439 = vcmask 7168
        %v440 = vsel %vm439, %v437, 0.0
        %v441 = vsel %vm439, %v438, 0.0
        %v442 = vadd.f32 %v440, %v441
        %443 = vadd.xlane.f32.xlu0 %v442
        %v444 = vpop.xlane.xlu0 %443
        %v445 = vrot.slane %v444, 4
        %v446 = vadd.f32 %v444, %v445
        %v447 = vrot.slane %v446, 2
        %v448 = vadd.f32 %v446, %v447
        %v449 = vrot.slane %v448, 1
        %v450 = vadd.f32 %v448, %v449
        %s451 = vtos %v450
        %v452 = vstv %s451
        %v453 = vadd.f32 %v434, %v452
        %454 = vst [vmem:[#allocation5] sm:$0xff] %v453
        %v455 = vld [vmem:[#allocation6] sm:$0xff]
        %v456 = vsel %vm432, %v343, 0.0
        %v457 = vsel %vm433, %v344, 0.0
        %v458 = vsel %vm439, %v456, 0.0
        %v459 = vsel %vm439, %v457, 0.0
        %v460 = vadd.f32 %v458, %v459
        %461 = vadd.xlane.f32.xlu0 %v460
        %v462 = vpop.xlane.xlu0 %461
        %v463 = vrot.slane %v462, 4
        %v464 = vadd.f32 %v462, %v463
        %v465 = vrot.slane %v464, 2
        %v466 = vadd.f32 %v464, %v465
        %v467 = vrot.slane %v466, 1
        %v468 = vadd.f32 %v466, %v467
        %s469 = vtos %v468
        %v470 = vstv %s469
        %v471 = vadd.f32 %v455, %v470
        %472 = vst [vmem:[#allocation6] sm:$0xff] %v471
        // Predicated region
        $region41: #{tpu_custom_call.1} parent=31 // pred_check
          %p473 = pneg %p145
        $region42: #{tpu_custom_call.1} parent=31 // pred_check_branch
          %475 = sbr.rel (%p473) target = $region44
        $region43: #{tpu_custom_call.1} parent=31 // pred_region
          %s477 = ssub.s32 128, 128
          %478 = vsyncadd [#allocation4], %s477
          %s479 = smul.addr %s25, 128
          %s480 = scalar_lea.hbm %s3, %s479
          %s482 = sshll.u32 [#allocation5], 4
          %s483 = int_to_ptr.vmem [resolvable:$true] %s482
          %485 = dma.vmem_to_hbm [thread:$0]  %s483, 128, %s480, [#allocation4]
        $region44: #{tpu_custom_call.1} parent=31 // pred_fallthru
          _
        // Predicated region
        $region45: #{tpu_custom_call.1} parent=31 // pred_check
          %p486 = pneg %p171
        $region46: #{tpu_custom_call.1} parent=31 // pred_check_branch
          %488 = sbr.rel (%p486) target = $region48
        $region47: #{tpu_custom_call.1} parent=31 // pred_region
          %s490 = ssub.s32 128, 128
          %491 = vsyncadd [#allocation7], %s490
          %s492 = smul.addr %s25, 128
          %s493 = scalar_lea.hbm %s4, %s492
          %s495 = sshll.u32 [#allocation6], 4
          %s496 = int_to_ptr.vmem [resolvable:$true] %s495
          %498 = dma.vmem_to_hbm [thread:$0]  %s496, 128, %s493, [#allocation7]
        $region48: #{tpu_custom_call.1} parent=31 // pred_fallthru
          _
        // Predicated region
        $region49: #{tpu_custom_call.1} parent=31 // pred_check
          %p499 = pneg %p145
        $region50: #{tpu_custom_call.1} parent=31 // pred_check_branch
          %501 = sbr.rel (%p499) target = $region52
        $region51: #{tpu_custom_call.1} parent=31 // pred_region
          %502 = dma.done [#allocation4], 128
        $region52: #{tpu_custom_call.1} parent=31 // pred_fallthru
          _
        // Predicated region
        $region53: #{tpu_custom_call.1} parent=31 // pred_check
          %p503 = pneg %p171
        $region54: #{tpu_custom_call.1} parent=31 // pred_check_branch
          %505 = sbr.rel (%p503) target = $region56
        $region55: #{tpu_custom_call.1} parent=31 // pred_region
          %506 = dma.done [#allocation7], 128
        $region56: #{tpu_custom_call.1} parent=31 // pred_fallthru
          _
      $region32: #{tpu_custom_call.1} parent=5 // pred_fallthru
        _
      %p507 = scmp.le.s32.totalorder 2, %s16
      // Predicated region
      $region57: #{tpu_custom_call.1} parent=5 // pred_check
        %p508 = pneg %p507
      $region58: #{tpu_custom_call.1} parent=5 // pred_check_branch
        %510 = sbr.rel (%p508) target = $region60
      $region59: #{tpu_custom_call.1} parent=5 // pred_region
        %s511 = ssub.s32 %s16, 2
      $region60: #{tpu_custom_call.1} parent=5 // pred_fallthru
        _
    $region6: #{tpu_custom_call.1} parent=1 // loop_footer
      %s20 = sadd.s32 1, %s16
    $region7: #{tpu_custom_call.1} parent=1 // loop_footer_branch
      %15 = sbr.rel target = $region3
    $region8: #{tpu_custom_call.1} parent=1 // loop_exit
      _
    %512 = vsyncpa [#allocation3], 1
    %s513 = scalar_lea.sflag [#allocation3], 1
    %514 = vsyncpa %s513, 1
    %515 = vsyncpa [#allocation4], 1
    %s516 = scalar_lea.sflag [#allocation4], 1
    %517 = vsyncpa %s516, 1
    %518 = vsyncpa [#allocation7], 1

</llo_original>
